<compile_context>
chip_gen: v7x
topology: tpu7x:2x2x1
jax: 0.10.0
libtpu: 0.0.40
codegen_flags: <defaults>
</compile_context>

<pallas_src>
import math
import numpy as np

import jax
import jax.numpy as jnp
from jax.experimental import pallas as pl
from jax.experimental.pallas import tpu as pltpu


# --------------------------------------------------------------------------
# Parameter / buffer setup (plain numpy/JAX glue, matches torch __init__)
# --------------------------------------------------------------------------
def point_encoding(d_model, max_len=64):
    position = np.arange(0, max_len, dtype=np.float32)[:, None]
    div_term = np.exp(
        np.arange(0, d_model, 2, dtype=np.float32) * (-math.log(10000.0) / d_model)
    )
    pe = np.zeros((max_len, d_model), dtype=np.float32)
    pe[:, 0::2] = np.sin(position * div_term)
    pe[:, 1::2] = np.cos(position * div_term)
    return jnp.asarray(pe)  # (max_len, d_model)


def build_upsampling_idxs(base_control_points, max_control_points):
    number_iterations = int(math.log2(max_control_points // base_control_points)) + 1
    idxs_list = []
    idxs = np.arange(0, max_control_points + 1, max_control_points // base_control_points)
    idxs_list.append(idxs[:-1].copy())
    for _ in range(1, number_iterations):
        new_idxs = ((idxs[:-1] + idxs[1:]) // 2).astype(np.int64)
        idxs_list.append(new_idxs)
        idxs = np.sort(np.concatenate((idxs, new_idxs)))
    return number_iterations, idxs_list


def _round_up(x, m):
    return ((x + m - 1) // m) * m


def _pad_rows(x, rows):
    if rows == x.shape[0]:
        return x
    return jnp.pad(x, ((0, rows - x.shape[0]), (0, 0)))


# --------------------------------------------------------------------------
# Pallas kernels
# --------------------------------------------------------------------------
def _inner_block_kernel(tgt_ref, qp_ref, wb_ref, out_ref):
    """Residual per-control-point linear on a lane-dense (TB, C*D) tile.

    wb is the block-diagonal kron(I_C, W), so the single MXU dot applies W to
    every control point of every row at once.
    """
    x = tgt_ref[...] + qp_ref[...]
    y = jnp.dot(x, wb_ref[...], preferred_element_type=jnp.float32)
    out_ref[...] = (tgt_ref[...] + y).astype(out_ref.dtype)


def inner_linear_pallas(tgt2, qp2, w, num_control, *, tb=512):
    """tgt2, qp2: (N, C*D) lane-dense; w: (D, D). Returns (N, C*D)."""
    N, CD = tgt2.shape
    wb = jnp.kron(jnp.eye(num_control, dtype=w.dtype), w)        # (CD, CD)
    tb = min(tb, _round_up(N, 8))
    n_pad = _round_up(N, tb)
    tgt_p = _pad_rows(tgt2, n_pad)
    qp_p = _pad_rows(qp2, n_pad)

    out = pl.pallas_call(
        _inner_block_kernel,
        grid=(n_pad // tb,),
        in_specs=[
            pl.BlockSpec((tb, CD), lambda i: (i, 0)),
            pl.BlockSpec((tb, CD), lambda i: (i, 0)),
            pl.BlockSpec((CD, CD), lambda i: (0, 0)),            # W stays resident
        ],
        out_specs=pl.BlockSpec((tb, CD), lambda i: (i, 0)),
        out_shape=jax.ShapeDtypeStruct((n_pad, CD), tgt2.dtype),
        compiler_params=pltpu.CompilerParams(dimension_semantics=("parallel",)),
    )(tgt_p, qp_p, wb)
    return out[:N]


def upsample_inner_fused(tgt2, qp2, ins_tgt2, ins_qp2, w, num_control, *, tb=512):
    """Fused control-point upsampling + synthetic inner residual linear.

    tgt2, qp2      : (N, C*D) lane-dense flattened activations (N = B*Q)
    ins_tgt2/qp2   : (1, C*D) point-embedding inserts (shared across rows)
    w              : (D, D) inner weight
    Returns (inner_out, new_tgt, new_qp), each (N, 2*C*D).
    """
    N, CD = tgt2.shape
    C = num_control
    D = CD // C
    CD2 = 2 * CD
    wb2 = jnp.kron(jnp.eye(2 * C, dtype=w.dtype), w)             # (2CD, 2CD)

    tb = min(tb, _round_up(N, 8))
    n_pad = _round_up(N, tb)
    tgt_p = _pad_rows(tgt2, n_pad)
    qp_p = _pad_rows(qp2, n_pad)

    def kernel(tgt_ref, qp_ref, ins_tgt_ref, ins_qp_ref, wb_ref,
               inner_ref, new_tgt_ref, new_qp_ref):
        TB = tgt_ref.shape[0]
        tgt = tgt_ref[...]                                        # (TB, CD)
        qp = qp_ref[...]
        ins_tgt = jnp.broadcast_to(ins_tgt_ref[...], (TB, CD))    # resident consts
        ins_qp = jnp.broadcast_to(ins_qp_ref[...], (TB, CD))

        # Interleave original / inserted control points at D-lane granularity
        # directly into the lane-dense (TB, 2*C*D) VMEM output blocks.  The
        # HBM writeback of each block is one dense DMA (no strided HBM stores).
        for c in range(C):
            src = slice(c * D, (c + 1) * D)
            dst_o = slice(2 * c * D, (2 * c + 1) * D)
            dst_i = slice((2 * c + 1) * D, (2 * c + 2) * D)
            new_tgt_ref[:, dst_o] = tgt[:, src]
            new_tgt_ref[:, dst_i] = ins_tgt[:, src]
            new_qp_ref[:, dst_o] = qp[:, src]
            new_qp_ref[:, dst_i] = ins_qp[:, src]

        new_tgt = new_tgt_ref[...]                                # (TB, 2CD)
        new_qp = new_qp_ref[...]

        # Fused synthetic inner layer: out = new_tgt + (new_tgt + new_qp) @ W,
        # applied per control point == block-diagonal wb2 on the flat layout.
        x = new_tgt + new_qp
        y = jnp.dot(x, wb_ref[...], preferred_element_type=jnp.float32)
        inner_ref[...] = (new_tgt + y).astype(inner_ref.dtype)

    inner_o, new_tgt_o, new_qp_o = pl.pallas_call(
        kernel,
        grid=(n_pad // tb,),
        in_specs=[
            pl.BlockSpec((tb, CD), lambda i: (i, 0)),
            pl.BlockSpec((tb, CD), lambda i: (i, 0)),
            pl.BlockSpec((1, CD), lambda i: (0, 0)),              # inserts resident
            pl.BlockSpec((1, CD), lambda i: (0, 0)),
            pl.BlockSpec((CD2, CD2), lambda i: (0, 0)),           # weight resident
        ],
        out_specs=(
            pl.BlockSpec((tb, CD2), lambda i: (i, 0)),
            pl.BlockSpec((tb, CD2), lambda i: (i, 0)),
            pl.BlockSpec((tb, CD2), lambda i: (i, 0)),
        ),
        out_shape=(
            jax.ShapeDtypeStruct((n_pad, CD2), tgt2.dtype),
            jax.ShapeDtypeStruct((n_pad, CD2), tgt2.dtype),
            jax.ShapeDtypeStruct((n_pad, CD2), qp2.dtype),
        ),
        compiler_params=pltpu.CompilerParams(dimension_semantics=("parallel",)),
    )(tgt_p, qp_p, ins_tgt2, ins_qp2, wb2)
    return inner_o[:N], new_tgt_o[:N], new_qp_o[:N]


# --------------------------------------------------------------------------
# Module wrappers
# --------------------------------------------------------------------------
class SyntheticInnerDecoderLayer:
    """Deterministic stand-in for the injected `inner` norm decoder layer.

    out = tgt + (tgt + query_pos) @ W, applied per control point.
    """

    def __init__(self, model_dimension, key):
        self.w = (jax.random.normal(key, (model_dimension, model_dimension),
                                    dtype=jnp.float32) * 0.02)

    def __call__(self, tgt, query_pos, reference_points, src, src_spatial_shapes,
                 level_start_index, src_padding_mask=None, cls_token=None,
                 reference_boxes=None):
        B, Q, C, D = tgt.shape
        out2 = inner_linear_pallas(tgt.reshape(B * Q, C * D),
                                   query_pos.reshape(B * Q, C * D),
                                   self.w, C)
        return (out2.reshape(B, Q, C, D), None)


class UpsamplingDecoderLayerPallas:
    def __init__(self, model_dimension, base_control_points, max_control_points, inner):
        self.model_dimension = model_dimension
        self.base_control_points = base_control_points
        self.max_control_points = max_control_points
        self.inner = inner
        self.point_embedding = point_encoding(model_dimension * 2,
                                              max_len=max_control_points)
        self.number_iterations, self.idxs = build_upsampling_idxs(
            base_control_points, max_control_points)

    def __call__(self, tgt, query_pos, reference_points, src, src_spatial_shapes,
                 level_start_index, src_padding_mask=None, lid=0, cls_token=None,
                 reference_boxes=None):
        if lid == 0:
            return self.inner(tgt, query_pos, reference_points, src,
                              src_spatial_shapes, level_start_index,
                              src_padding_mask, cls_token=cls_token,
                              reference_boxes=reference_boxes)

        B, Q, C, D = tgt.shape
        L = reference_points.shape[-2]
        CD = C * D

        # point_embedding[idxs[lid]] -> split into (insert_query_pos, insert_tgt)
        ins = self.point_embedding[np.asarray(self.idxs[lid])]      # (C, 2D)
        ins_qp = ins[:, :D].reshape(1, CD)
        ins_tgt = ins[:, D:].reshape(1, CD)

        tgt2 = tgt.reshape(B * Q, CD)
        qp2 = query_pos.reshape(B * Q, CD)

        # Fused Pallas pass: upsampling interleave + synthetic inner layer.
        inner2, new_tgt2, new_qp2 = upsample_inner_fused(
            tgt2, qp2, ins_tgt, ins_qp, self.inner.w, C)

        new_tgt = new_tgt2.reshape(B, Q, 2 * C, D)
        new_qp = new_qp2.reshape(B, Q, 2 * C, D)
        inner_out = inner2.reshape(B, Q, 2 * C, D)

        # reference_points path: last dim L*2 = 4 (3% lane utilization in a
        # kernel) and tiny -> plain JAX, per the performance review.
        rp_f = reference_points.reshape(B * Q, C, L, 2)
        ins_rp = (rp_f + jnp.roll(rp_f, -1, axis=1)) * 0.5
        _new_rp = jnp.stack((rp_f, ins_rp), axis=2).reshape(B, Q, 2 * C, L, 2)
        # _new_rp is what a real `inner` would receive; the synthetic stand-in
        # does not consume reference_points.
        ins_rp = ins_rp.reshape(B, Q, C, L, 2)

        return (inner_out, (new_tgt, new_qp, ins_rp))


# --------------------------------------------------------------------------
# Pure-JAX reference (for correctness check only)
# --------------------------------------------------------------------------
def reference_forward(module, tgt, qp, rp, inner_w, lid):
    B, Q, C, D = tgt.shape
    L = rp.shape[-2]
    ins = module.point_embedding[np.asarray(module.idxs[lid])]
    ins_qp, ins_tgt = ins[:, :D], ins[:, D:]
    tgt_f = tgt.reshape(B * Q, C, D)
    qp_f = qp.reshape(B * Q, C, D)
    rp_f = rp.reshape(B * Q, C, L, 2)
    ins_rp = (rp_f + jnp.roll(rp_f, -1, axis=1)) / 2.0
    ins_qp_b = jnp.broadcast_to(ins_qp[None], (B * Q, C, D))
    ins_tgt_b = jnp.broadcast_to(ins_tgt[None], (B * Q, C, D))
    new_qp = jnp.stack((qp_f, ins_qp_b), axis=2).reshape(B, Q, 2 * C, D)
    new_tgt = jnp.stack((tgt_f, ins_tgt_b), axis=2).reshape(B, Q, 2 * C, D)
    ins_rp = ins_rp.reshape(B, Q, C, L, 2)
    x = new_tgt + new_qp
    inner_out = new_tgt + jnp.einsum('bqcd,de->bqce', x, inner_w)
    return inner_out, new_tgt, new_qp, ins_rp


# --------------------------------------------------------------------------
if __name__ == "__main__":
    D = 32                      # model_dimension
    BASE, MAXC = 4, 16          # base / max control points
    B, Q, C, L = 2, 3, BASE, 2  # at lid=1 the incoming tgt has C=BASE control pts
    LID = 1

    key = jax.random.PRNGKey(0)
    k_tgt, k_qp, k_rp, k_src, k_w = jax.random.split(key, 5)

    tgt = jax.random.normal(k_tgt, (B, Q, C, D), dtype=jnp.float32)
    query_pos = jax.random.normal(k_qp, (B, Q, C, D), dtype=jnp.float32)
    reference_points = jax.random.uniform(k_rp, (B, Q, C, L, 2), dtype=jnp.float32)
    src = jax.random.normal(k_src, (B, 20, D), dtype=jnp.float32)
    src_spatial_shapes = jnp.array([[4, 4], [2, 2]], dtype=jnp.int32)
    level_start_index = jnp.array([0, 16], dtype=jnp.int32)

    inner = SyntheticInnerDecoderLayer(D, k_w)
    module = UpsamplingDecoderLayerPallas(D, BASE, MAXC, inner)

    # --- lid > 0 (upsampling + fused inner) path -------------------------
    out, (new_tgt, new_qp, ins_rp) = module(
        tgt, query_pos, reference_points, src, src_spatial_shapes,
        level_start_index, src_padding_mask=None, lid=LID)
    jax.block_until_ready((out, new_tgt, new_qp, ins_rp))

    ref_out, ref_tgt, ref_qp, ref_irp = reference_forward(
        module, tgt, query_pos, reference_points, inner.w, LID)

    assert out.shape == (B, Q, 2 * C, D)
    assert new_tgt.shape == (B, Q, 2 * C, D)
    assert new_qp.shape == (B, Q, 2 * C, D)
    assert ins_rp.shape == (B, Q, C, L, 2)
    np.testing.assert_allclose(np.asarray(out), np.asarray(ref_out), atol=1e-5, rtol=1e-5)
    np.testing.assert_allclose(np.asarray(new_tgt), np.asarray(ref_tgt), atol=1e-6, rtol=1e-6)
    np.testing.assert_allclose(np.asarray(new_qp), np.asarray(ref_qp), atol=1e-6, rtol=1e-6)
    np.testing.assert_allclose(np.asarray(ins_rp), np.asarray(ref_irp), atol=1e-6, rtol=1e-6)

    # --- lid == 0 (passthrough to inner) path -----------------------------
    out0, _ = module(tgt, query_pos, reference_points, src, src_spatial_shapes,
                     level_start_index, src_padding_mask=None, lid=0)
    jax.block_until_ready(out0)
    ref0 = tgt + jnp.einsum('bqcd,de->bqce', tgt + query_pos, inner.w)
    np.testing.assert_allclose(np.asarray(out0), np.asarray(ref0), atol=1e-5, rtol=1e-5)

    print("KERNEL_OK")
</pallas_src>

<mosaic_0001>
module attributes {stable_mosaic.version = 11 : i64} {
  func.func @kernel(%arg0: i32, %arg1: memref<8x128xf32, #tpu.memory_space<vmem>>, %arg2: memref<8x128xf32, #tpu.memory_space<vmem>>, %arg3: memref<1x128xf32, #tpu.memory_space<vmem>>, %arg4: memref<1x128xf32, #tpu.memory_space<vmem>>, %arg5: memref<256x256xf32, #tpu.memory_space<vmem>>, %arg6: memref<8x256xf32, #tpu.memory_space<vmem>>, %arg7: memref<8x256xf32, #tpu.memory_space<vmem>>, %arg8: memref<8x256xf32, #tpu.memory_space<vmem>>) attributes {dimension_semantics = [#tpu.dimension_semantics<parallel>], iteration_bounds = array<i64: 1>, scalar_prefetch = 0 : i64, scratch_operands = 0 : i64, tpu.core_type = #tpu.core_type<tc>, window_params = [{transform_indices = @transform_0, window_bounds = array<i64: 8, 128>}, {transform_indices = @transform_1, window_bounds = array<i64: 8, 128>}, {pipeline_mode = #tpu.pipeline_mode<synchronous>, transform_indices = @transform_2, window_bounds = array<i64: 1, 128>}, {pipeline_mode = #tpu.pipeline_mode<synchronous>, transform_indices = @transform_3, window_bounds = array<i64: 1, 128>}, {pipeline_mode = #tpu.pipeline_mode<synchronous>, transform_indices = @transform_4, window_bounds = array<i64: 256, 256>}, {transform_indices = @transform_5, window_bounds = array<i64: 8, 256>}, {transform_indices = @transform_6, window_bounds = array<i64: 8, 256>}, {transform_indices = @transform_7, window_bounds = array<i64: 8, 256>}]} {
    %c0 = arith.constant 0 : index
    %c0_0 = arith.constant 0 : index
    %0 = vector.load %arg1[%c0, %c0_0] : memref<8x128xf32, #tpu.memory_space<vmem>>, vector<8x128xf32>
    %c0_1 = arith.constant 0 : index
    %c0_2 = arith.constant 0 : index
    %1 = vector.load %arg2[%c0_1, %c0_2] : memref<8x128xf32, #tpu.memory_space<vmem>>, vector<8x128xf32>
    %c0_3 = arith.constant 0 : index
    %c0_4 = arith.constant 0 : index
    %2 = vector.load %arg3[%c0_3, %c0_4] : memref<1x128xf32, #tpu.memory_space<vmem>>, vector<1x128xf32>
    %3 = vector.shape_cast %2 : vector<1x128xf32> to vector<1x128xf32>
    %4 = vector.broadcast %3 : vector<1x128xf32> to vector<8x128xf32>
    %c0_5 = arith.constant 0 : index
    %c0_6 = arith.constant 0 : index
    %5 = vector.load %arg4[%c0_5, %c0_6] : memref<1x128xf32, #tpu.memory_space<vmem>>, vector<1x128xf32>
    %6 = vector.shape_cast %5 : vector<1x128xf32> to vector<1x128xf32>
    %7 = vector.broadcast %6 : vector<1x128xf32> to vector<8x128xf32>
    %8 = vector.extract_strided_slice %0 {offsets = [0, 0], sizes = [8, 32], strides = [1, 1]} : vector<8x128xf32> to vector<8x32xf32>
    %c0_7 = arith.constant 0 : index
    %c0_8 = arith.constant 0 : index
    %9 = vector.load %arg7[%c0_7, %c0_8] : memref<8x256xf32, #tpu.memory_space<vmem>>, vector<8x32xf32>
    tpu.vector_store %arg7[%c0_7, %c0_8], %8 {strides = array<i32>} : memref<8x256xf32, #tpu.memory_space<vmem>>, vector<8x32xf32>,
    %10 = vector.extract_strided_slice %4 {offsets = [0, 0], sizes = [8, 32], strides = [1, 1]} : vector<8x128xf32> to vector<8x32xf32>
    %c0_9 = arith.constant 0 : index
    %c32 = arith.constant 32 : index
    %11 = vector.load %arg7[%c0_9, %c32] : memref<8x256xf32, #tpu.memory_space<vmem>>, vector<8x32xf32>
    tpu.vector_store %arg7[%c0_9, %c32], %10 {strides = array<i32>} : memref<8x256xf32, #tpu.memory_space<vmem>>, vector<8x32xf32>,
    %12 = vector.extract_strided_slice %1 {offsets = [0, 0], sizes = [8, 32], strides = [1, 1]} : vector<8x128xf32> to vector<8x32xf32>
    %c0_10 = arith.constant 0 : index
    %c0_11 = arith.constant 0 : index
    %13 = vector.load %arg8[%c0_10, %c0_11] : memref<8x256xf32, #tpu.memory_space<vmem>>, vector<8x32xf32>
    tpu.vector_store %arg8[%c0_10, %c0_11], %12 {strides = array<i32>} : memref<8x256xf32, #tpu.memory_space<vmem>>, vector<8x32xf32>,
    %14 = vector.extract_strided_slice %7 {offsets = [0, 0], sizes = [8, 32], strides = [1, 1]} : vector<8x128xf32> to vector<8x32xf32>
    %c0_12 = arith.constant 0 : index
    %c32_13 = arith.constant 32 : index
    %15 = vector.load %arg8[%c0_12, %c32_13] : memref<8x256xf32, #tpu.memory_space<vmem>>, vector<8x32xf32>
    tpu.vector_store %arg8[%c0_12, %c32_13], %14 {strides = array<i32>} : memref<8x256xf32, #tpu.memory_space<vmem>>, vector<8x32xf32>,
    %16 = vector.extract_strided_slice %0 {offsets = [0, 32], sizes = [8, 32], strides = [1, 1]} : vector<8x128xf32> to vector<8x32xf32>
    %c0_14 = arith.constant 0 : index
    %c64 = arith.constant 64 : index
    %17 = vector.load %arg7[%c0_14, %c64] : memref<8x256xf32, #tpu.memory_space<vmem>>, vector<8x32xf32>
    tpu.vector_store %arg7[%c0_14, %c64], %16 {strides = array<i32>} : memref<8x256xf32, #tpu.memory_space<vmem>>, vector<8x32xf32>,
    %18 = vector.extract_strided_slice %4 {offsets = [0, 32], sizes = [8, 32], strides = [1, 1]} : vector<8x128xf32> to vector<8x32xf32>
    %c0_15 = arith.constant 0 : index
    %c96 = arith.constant 96 : index
    %19 = vector.load %arg7[%c0_15, %c96] : memref<8x256xf32, #tpu.memory_space<vmem>>, vector<8x32xf32>
    tpu.vector_store %arg7[%c0_15, %c96], %18 {strides = array<i32>} : memref<8x256xf32, #tpu.memory_space<vmem>>, vector<8x32xf32>,
    %20 = vector.extract_strided_slice %1 {offsets = [0, 32], sizes = [8, 32], strides = [1, 1]} : vector<8x128xf32> to vector<8x32xf32>
    %c0_16 = arith.constant 0 : index
    %c64_17 = arith.constant 64 : index
    %21 = vector.load %arg8[%c0_16, %c64_17] : memref<8x256xf32, #tpu.memory_space<vmem>>, vector<8x32xf32>
    tpu.vector_store %arg8[%c0_16, %c64_17], %20 {strides = array<i32>} : memref<8x256xf32, #tpu.memory_space<vmem>>, vector<8x32xf32>,
    %22 = vector.extract_strided_slice %7 {offsets = [0, 32], sizes = [8, 32], strides = [1, 1]} : vector<8x128xf32> to vector<8x32xf32>
    %c0_18 = arith.constant 0 : index
    %c96_19 = arith.constant 96 : index
    %23 = vector.load %arg8[%c0_18, %c96_19] : memref<8x256xf32, #tpu.memory_space<vmem>>, vector<8x32xf32>
    tpu.vector_store %arg8[%c0_18, %c96_19], %22 {strides = array<i32>} : memref<8x256xf32, #tpu.memory_space<vmem>>, vector<8x32xf32>,
    %24 = vector.extract_strided_slice %0 {offsets = [0, 64], sizes = [8, 32], strides = [1, 1]} : vector<8x128xf32> to vector<8x32xf32>
    %c0_20 = arith.constant 0 : index
    %c128 = arith.constant 128 : index
    %25 = vector.load %arg7[%c0_20, %c128] : memref<8x256xf32, #tpu.memory_space<vmem>>, vector<8x32xf32>
    tpu.vector_store %arg7[%c0_20, %c128], %24 {strides = array<i32>} : memref<8x256xf32, #tpu.memory_space<vmem>>, vector<8x32xf32>,
    %26 = vector.extract_strided_slice %4 {offsets = [0, 64], sizes = [8, 32], strides = [1, 1]} : vector<8x128xf32> to vector<8x32xf32>
    %c0_21 = arith.constant 0 : index
    %c160 = arith.constant 160 : index
    %27 = vector.load %arg7[%c0_21, %c160] : memref<8x256xf32, #tpu.memory_space<vmem>>, vector<8x32xf32>
    tpu.vector_store %arg7[%c0_21, %c160], %26 {strides = array<i32>} : memref<8x256xf32, #tpu.memory_space<vmem>>, vector<8x32xf32>,
    %28 = vector.extract_strided_slice %1 {offsets = [0, 64], sizes = [8, 32], strides = [1, 1]} : vector<8x128xf32> to vector<8x32xf32>
    %c0_22 = arith.constant 0 : index
    %c128_23 = arith.constant 128 : index
    %29 = vector.load %arg8[%c0_22, %c128_23] : memref<8x256xf32, #tpu.memory_space<vmem>>, vector<8x32xf32>
    tpu.vector_store %arg8[%c0_22, %c128_23], %28 {strides = array<i32>} : memref<8x256xf32, #tpu.memory_space<vmem>>, vector<8x32xf32>,
    %30 = vector.extract_strided_slice %7 {offsets = [0, 64], sizes = [8, 32], strides = [1, 1]} : vector<8x128xf32> to vector<8x32xf32>
    %c0_24 = arith.constant 0 : index
    %c160_25 = arith.constant 160 : index
    %31 = vector.load %arg8[%c0_24, %c160_25] : memref<8x256xf32, #tpu.memory_space<vmem>>, vector<8x32xf32>
    tpu.vector_store %arg8[%c0_24, %c160_25], %30 {strides = array<i32>} : memref<8x256xf32, #tpu.memory_space<vmem>>, vector<8x32xf32>,
    %32 = vector.extract_strided_slice %0 {offsets = [0, 96], sizes = [8, 32], strides = [1, 1]} : vector<8x128xf32> to vector<8x32xf32>
    %c0_26 = arith.constant 0 : index
    %c192 = arith.constant 192 : index
    %33 = vector.load %arg7[%c0_26, %c192] : memref<8x256xf32, #tpu.memory_space<vmem>>, vector<8x32xf32>
    tpu.vector_store %arg7[%c0_26, %c192], %32 {strides = array<i32>} : memref<8x256xf32, #tpu.memory_space<vmem>>, vector<8x32xf32>,
    %34 = vector.extract_strided_slice %4 {offsets = [0, 96], sizes = [8, 32], strides = [1, 1]} : vector<8x128xf32> to vector<8x32xf32>
    %c0_27 = arith.constant 0 : index
    %c224 = arith.constant 224 : index
    %35 = vector.load %arg7[%c0_27, %c224] : memref<8x256xf32, #tpu.memory_space<vmem>>, vector<8x32xf32>
    tpu.vector_store %arg7[%c0_27, %c224], %34 {strides = array<i32>} : memref<8x256xf32, #tpu.memory_space<vmem>>, vector<8x32xf32>,
    %36 = vector.extract_strided_slice %1 {offsets = [0, 96], sizes = [8, 32], strides = [1, 1]} : vector<8x128xf32> to vector<8x32xf32>
    %c0_28 = arith.constant 0 : index
    %c192_29 = arith.constant 192 : index
    %37 = vector.load %arg8[%c0_28, %c192_29] : memref<8x256xf32, #tpu.memory_space<vmem>>, vector<8x32xf32>
    tpu.vector_store %arg8[%c0_28, %c192_29], %36 {strides = array<i32>} : memref<8x256xf32, #tpu.memory_space<vmem>>, vector<8x32xf32>,
    %38 = vector.extract_strided_slice %7 {offsets = [0, 96], sizes = [8, 32], strides = [1, 1]} : vector<8x128xf32> to vector<8x32xf32>
    %c0_30 = arith.constant 0 : index
    %c224_31 = arith.constant 224 : index
    %39 = vector.load %arg8[%c0_30, %c224_31] : memref<8x256xf32, #tpu.memory_space<vmem>>, vector<8x32xf32>
    tpu.vector_store %arg8[%c0_30, %c224_31], %38 {strides = array<i32>} : memref<8x256xf32, #tpu.memory_space<vmem>>, vector<8x32xf32>,
    %c0_32 = arith.constant 0 : index
    %c0_33 = arith.constant 0 : index
    %40 = vector.load %arg7[%c0_32, %c0_33] : memref<8x256xf32, #tpu.memory_space<vmem>>, vector<8x256xf32>
    %c0_34 = arith.constant 0 : index
    %c0_35 = arith.constant 0 : index
    %41 = vector.load %arg8[%c0_34, %c0_35] : memref<8x256xf32, #tpu.memory_space<vmem>>, vector<8x256xf32>
    %42 = arith.addf %40, %41 : vector<8x256xf32>
    %c0_36 = arith.constant 0 : index
    %c0_37 = arith.constant 0 : index
    %43 = vector.load %arg5[%c0_36, %c0_37] : memref<256x256xf32, #tpu.memory_space<vmem>>, vector<256x256xf32>
    %cst = arith.constant dense<0.000000e+00> : vector<8x256xf32>
    %44 = tpu.matmul %42, %43, %cst {dimension_numbers = #tpu.dot_dimension_numbers<[1], [0], [0], [1], [0, 0, 1, 1], [], []>} : vector<8x256xf32>, vector<256x256xf32>, vector<8x256xf32> -> vector<8x256xf32>
    %45 = arith.addf %40, %44 : vector<8x256xf32>
    %c0_38 = arith.constant 0 : index
    %c0_39 = arith.constant 0 : index
    %46 = vector.load %arg6[%c0_38, %c0_39] : memref<8x256xf32, #tpu.memory_space<vmem>>, vector<8x256xf32>
    tpu.vector_store %arg6[%c0_38, %c0_39], %45 {strides = array<i32>} : memref<8x256xf32, #tpu.memory_space<vmem>>, vector<8x256xf32>,
    return
  }
  func.func @transform_0(%arg0: i32) -> (i32, i32) {
    %c0_i32 = arith.constant 0 : i32
    %c0_i32_0 = arith.constant 0 : i32
    return %arg0, %c0_i32 : i32, i32
  }
  func.func @transform_1(%arg0: i32) -> (i32, i32) {
    %c0_i32 = arith.constant 0 : i32
    %c0_i32_0 = arith.constant 0 : i32
    return %arg0, %c0_i32 : i32, i32
  }
  func.func @transform_2(%arg0: i32) -> (i32, i32) {
    %c0_i32 = arith.constant 0 : i32
    %c0_i32_0 = arith.constant 0 : i32
    %c0_i32_1 = arith.constant 0 : i32
    return %c0_i32, %c0_i32_0 : i32, i32
  }
  func.func @transform_3(%arg0: i32) -> (i32, i32) {
    %c0_i32 = arith.constant 0 : i32
    %c0_i32_0 = arith.constant 0 : i32
    %c0_i32_1 = arith.constant 0 : i32
    return %c0_i32, %c0_i32_0 : i32, i32
  }
  func.func @transform_4(%arg0: i32) -> (i32, i32) {
    %c0_i32 = arith.constant 0 : i32
    %c0_i32_0 = arith.constant 0 : i32
    %c0_i32_1 = arith.constant 0 : i32
    return %c0_i32, %c0_i32_0 : i32, i32
  }
  func.func @transform_5(%arg0: i32) -> (i32, i32) {
    %c0_i32 = arith.constant 0 : i32
    %c0_i32_0 = arith.constant 0 : i32
    return %arg0, %c0_i32 : i32, i32
  }
  func.func @transform_6(%arg0: i32) -> (i32, i32) {
    %c0_i32 = arith.constant 0 : i32
    %c0_i32_0 = arith.constant 0 : i32
    return %arg0, %c0_i32 : i32, i32
  }
  func.func @transform_7(%arg0: i32) -> (i32, i32) {
    %c0_i32 = arith.constant 0 : i32
    %c0_i32_0 = arith.constant 0 : i32
    return %arg0, %c0_i32 : i32, i32
  }
}

</mosaic_0001>

<llo_original>
// kernel: tpu_custom_call.1
$region0: #{tpu_custom_call.1}
  #allocation0 [shape = 'u32[]', space=smem, size = 0x4, offset = 0x4, fixed_abs, tag = 'smem constant byte address 0x4 - core index']
  #allocation1 [shape = 'u32[144,128]{1,0:T(1,128)}', space=vmem, size = 0x12000, scoped, tag = 'internal scratch']
  %s0 = inlined_call_operand.hbm [shape: f32[8,128], index: 0, kind: input, shape index: {}]
  %s1 = inlined_call_operand.hbm [shape: f32[8,128], index: 1, kind: input, shape index: {}]
  %s2 = inlined_call_operand.vmem [shape: f32[1,128], index: 2, kind: input, shape index: {}]
  %s3 = inlined_call_operand.vmem [shape: f32[1,128], index: 3, kind: input, shape index: {}]
  %s4 = inlined_call_operand.hbm [shape: f32[256,256], index: 4, kind: input, shape index: {}]
  %s5 = inlined_call_operand.hbm [shape: f32[8,256], index: 5, kind: output, shape index: {0}]
  %s6 = inlined_call_operand.hbm [shape: f32[8,256], index: 6, kind: output, shape index: {1}]
  %s7 = inlined_call_operand.hbm [shape: f32[8,256], index: 7, kind: output, shape index: {2}]
  %8 = xla_tuple %s5, %s6, %s7
  %s9 = sld [smem:[#allocation0]]
  $region58: #{tpu_custom_call.1} parent=0
    _
  %s11 = ssub.s32 1, %s9
  %s12 = scalar_select 0, %s11, %s9
  $region1: #{tpu_custom_call.1} parent=0
    #allocation2 [shape = 'u8[4096]{0}', space=vmem, size = 0x1000, scoped, tag = 'input window, operand 0, single buffered']
    #allocation3 [shape = 's32[1]{0}', space=sflag, size = 0x4, scoped, tag = 'scoped memory for tpu_custom_call.1']
    #allocation4 [shape = 's32[1]{0}', space=sflag, size = 0x4, scoped, tag = 'scoped memory for tpu_custom_call.1']
    #allocation5 [shape = 'u8[4096]{0}', space=vmem, size = 0x1000, scoped, tag = 'input window, operand 1, single buffered']
    #allocation6 [shape = 's32[1]{0}', space=sflag, size = 0x4, scoped, tag = 'scoped memory for tpu_custom_call.1']
    #allocation7 [shape = 'u8[262144]{0}', space=vmem, size = 0x40000, scoped, tag = 'input window, operand 4, single buffered']
    #allocation8 [shape = 'u8[8192]{0}', space=vmem, size = 0x2000, scoped, tag = 'output window, operand 0, single buffered']
    #allocation9 [shape = 'u8[8192]{0}', space=vmem, size = 0x2000, scoped, tag = 'output window, operand 1, single buffered']
    #allocation10 [shape = 's32[1]{0}', space=sflag, size = 0x4, scoped, tag = 'scoped memory for tpu_custom_call.1']
    #allocation11 [shape = 'u8[8192]{0}', space=vmem, size = 0x2000, scoped, tag = 'output window, operand 2, single buffered']
    %13 = vsyncpa [#allocation3], 0
    %14 = vsyncpa [#allocation6], 0
    %15 = vsyncpa [#allocation4], 0
    %16 = vsyncpa [#allocation10], 0
    // Predicated region
    $region2: #{tpu_custom_call.1} parent=1 // pred_check
      _
    $region3: #{tpu_custom_call.1} parent=1 // pred_check_branch
      %18 = sbr.rel (0) target = $region5
    $region4: #{tpu_custom_call.1} parent=1 // pred_region
      %s20 = ssub.s32 128, 128
      %21 = vsyncadd [#allocation3], %s20
      %s23 = sshll.u32 [#allocation2], 4
      %s24 = int_to_ptr.vmem [resolvable:$true] %s23
      %26 = dma.hbm_to_vmem [thread:$0]  %s0, 128, %s24, [#allocation3]
    $region5: #{tpu_custom_call.1} parent=1 // pred_fallthru
      _
    // Predicated region
    $region6: #{tpu_custom_call.1} parent=1 // pred_check
      _
    $region7: #{tpu_custom_call.1} parent=1 // pred_check_branch
      %28 = sbr.rel (0) target = $region9
    $region8: #{tpu_custom_call.1} parent=1 // pred_region
      %s30 = ssub.s32 128, 128
      %31 = vsyncadd [#allocation6], %s30
      %s33 = sshll.u32 [#allocation5], 4
      %s34 = int_to_ptr.vmem [resolvable:$true] %s33
      %36 = dma.hbm_to_vmem [thread:$0]  %s1, 128, %s34, [#allocation6]
    $region9: #{tpu_custom_call.1} parent=1 // pred_fallthru
      _
    // Predicated region
    $region10: #{tpu_custom_call.1} parent=1 // pred_check
      _
    $region11: #{tpu_custom_call.1} parent=1 // pred_check_branch
      %38 = sbr.rel (0) target = $region13
    $region12: #{tpu_custom_call.1} parent=1 // pred_region
      _
    $region13: #{tpu_custom_call.1} parent=1 // pred_fallthru
      _
    // Predicated region
    $region14: #{tpu_custom_call.1} parent=1 // pred_check
      _
    $region15: #{tpu_custom_call.1} parent=1 // pred_check_branch
      %40 = sbr.rel (0) target = $region17
    $region16: #{tpu_custom_call.1} parent=1 // pred_region
      _
    $region17: #{tpu_custom_call.1} parent=1 // pred_fallthru
      _
    // Predicated region
    $region18: #{tpu_custom_call.1} parent=1 // pred_check
      _
    $region19: #{tpu_custom_call.1} parent=1 // pred_check_branch
      %42 = sbr.rel (0) target = $region21
    $region20: #{tpu_custom_call.1} parent=1 // pred_region
      %s44 = ssub.s32 8192, 8192
      %45 = vsyncadd [#allocation6], %s44
      %s46 = sshll.u32 [#allocation7], 4
      %s47 = int_to_ptr.vmem [resolvable:$true] %s46
      %52 = dma.hbm_to_vmem [thread:$0]  %s4, 8192, %s47, [#allocation6], 256, 256, 16
    $region21: #{tpu_custom_call.1} parent=1 // pred_fallthru
      _
    // Predicated region
    $region22: #{tpu_custom_call.1} parent=1 // pred_check
      _
    $region23: #{tpu_custom_call.1} parent=1 // pred_check_branch
      %54 = sbr.rel (0) target = $region25
    $region24: #{tpu_custom_call.1} parent=1 // pred_region
      %55 = dma.done [#allocation3], 128
    $region25: #{tpu_custom_call.1} parent=1 // pred_fallthru
      _
    // Predicated region
    $region26: #{tpu_custom_call.1} parent=1 // pred_check
      _
    $region27: #{tpu_custom_call.1} parent=1 // pred_check_branch
      %57 = sbr.rel (0) target = $region29
    $region28: #{tpu_custom_call.1} parent=1 // pred_region
      %58 = dma.done [#allocation6], 128
    $region29: #{tpu_custom_call.1} parent=1 // pred_fallthru
      _
    // Predicated region
    $region30: #{tpu_custom_call.1} parent=1 // pred_check
      _
    $region31: #{tpu_custom_call.1} parent=1 // pred_check_branch
      %60 = sbr.rel (0) target = $region33
    $region32: #{tpu_custom_call.1} parent=1 // pred_region
      %61 = dma.done [#allocation6], 8192
    $region33: #{tpu_custom_call.1} parent=1 // pred_fallthru
      _
    %v62 = vld [vmem:[#allocation2] sm:$0xff]
    %v63 = vld [vmem:[#allocation5] sm:$0xff]
    %v64 = vld [vmem:[%s2] sm:$0x1]
    %v65 = vld [vmem:[%s3] sm:$0x1]
    %vm66 = vcmask 261120
    %67 = vst.msk [vmem:[#allocation9] sm:$0xff] %vm66, %v62
    %v69 = vlaneseq
    %v70 = vshrl.u32 %v69, 7
    %v71 = vsub.s32 0, %v70
    %v72 = vrot.slane %v64, %v71
    %73 = vrot.lane.b32.xlu0 %v72, 32
    %v74 = vpop.permute.xlu0 %73
    %vm76 = vcmask 523520
    %77 = vst.msk [vmem:[#allocation9] sm:$0xff] %vm76, %v74
    %78 = vst.msk [vmem:[#allocation11] sm:$0xff] %vm66, %v63
    %v80 = vlaneseq
    %v81 = vshrl.u32 %v80, 7
    %v82 = vsub.s32 0, %v81
    %v83 = vrot.slane %v65, %v82
    %84 = vrot.lane.b32.xlu0 %v83, 32
    %v85 = vpop.permute.xlu0 %84
    %87 = vst.msk [vmem:[#allocation11] sm:$0xff] %vm76, %v85
    %89 = vrot.lane.b32.xlu0 %v62, 32
    %v90 = vpop.permute.xlu0 %89
    %vm92 = vcmask 785920
    %93 = vst.msk [vmem:[#allocation9] sm:$0xff] %vm92, %v90
    %94 = vrot.lane.b32.xlu0 %v72, 64
    %v95 = vpop.permute.xlu0 %94
    %vm97 = vcmask 1048320
    %98 = vst.msk [vmem:[#allocation9] sm:$0xff] %vm97, %v95
    %100 = vrot.lane.b32.xlu0 %v63, 32
    %v101 = vpop.permute.xlu0 %100
    %103 = vst.msk [vmem:[#allocation11] sm:$0xff] %vm92, %v101
    %104 = vrot.lane.b32.xlu0 %v83, 64
    %v105 = vpop.permute.xlu0 %104
    %107 = vst.msk [vmem:[#allocation11] sm:$0xff] %vm97, %v105
    %108 = vrot.lane.b32.xlu0 %v62, 64
    %v109 = vpop.permute.xlu0 %108
    %111 = vst.msk [vmem:[#allocation9 + $0x8] sm:$0xff] %vm66, %v109
    %112 = vrot.lane.b32.xlu0 %v72, 96
    %v113 = vpop.permute.xlu0 %112
    %115 = vst.msk [vmem:[#allocation9 + $0x8] sm:$0xff] %vm76, %v113
    %116 = vrot.lane.b32.xlu0 %v63, 64
    %v117 = vpop.permute.xlu0 %116
    %119 = vst.msk [vmem:[#allocation11 + $0x8] sm:$0xff] %vm66, %v117
    %120 = vrot.lane.b32.xlu0 %v83, 96
    %v121 = vpop.permute.xlu0 %120
    %123 = vst.msk [vmem:[#allocation11 + $0x8] sm:$0xff] %vm76, %v121
    %124 = vrot.lane.b32.xlu0 %v62, 96
    %v125 = vpop.permute.xlu0 %124
    %127 = vst.msk [vmem:[#allocation9 + $0x8] sm:$0xff] %vm92, %v125
    %129 = vst.msk [vmem:[#allocation9 + $0x8] sm:$0xff] %vm97, %v72
    %130 = vrot.lane.b32.xlu0 %v63, 96
    %v131 = vpop.permute.xlu0 %130
    %133 = vst.msk [vmem:[#allocation11 + $0x8] sm:$0xff] %vm92, %v131
    %135 = vst.msk [vmem:[#allocation11 + $0x8] sm:$0xff] %vm97, %v83
    %v136 = vld [vmem:[#allocation9] sm:$0xff]
    %v137 = vld [vmem:[#allocation9 + $0x8] sm:$0xff]
    %v138 = vld [vmem:[#allocation11] sm:$0xff]
    %v139 = vld [vmem:[#allocation11 + $0x8] sm:$0xff]
    %v140 = vadd.f32 %v136, %v138
    %v141 = vadd.f32 %v137, %v139
    %v142 = vld [vmem:[#allocation7] sm:$0xff]
    %v143 = vld [vmem:[#allocation7 + $0x8] sm:$0xff]
    %v144 = vld [vmem:[#allocation7 + $0x10] sm:$0xff]
    %v145 = vld [vmem:[#allocation7 + $0x18] sm:$0xff]
    %v146 = vld [vmem:[#allocation7 + $0x20] sm:$0xff]
    %v147 = vld [vmem:[#allocation7 + $0x28] sm:$0xff]
    %v148 = vld [vmem:[#allocation7 + $0x30] sm:$0xff]
    %v149 = vld [vmem:[#allocation7 + $0x38] sm:$0xff]
    %v150 = vld [vmem:[#allocation7 + $0x40] sm:$0xff]
    %v151 = vld [vmem:[#allocation7 + $0x48] sm:$0xff]
    %v152 = vld [vmem:[#allocation7 + $0x50] sm:$0xff]
    %v153 = vld [vmem:[#allocation7 + $0x58] sm:$0xff]
    %v154 = vld [vmem:[#allocation7 + $0x60] sm:$0xff]
    %v155 = vld [vmem:[#allocation7 + $0x68] sm:$0xff]
    %v156 = vld [vmem:[#allocation7 + $0x70] sm:$0xff]
    %v157 = vld [vmem:[#allocation7 + $0x78] sm:$0xff]
    %v158 = vld [vmem:[#allocation7 + $0x80] sm:$0xff]
    %v159 = vld [vmem:[#allocation7 + $0x88] sm:$0xff]
    %v160 = vld [vmem:[#allocation7 + $0x90] sm:$0xff]
    %v161 = vld [vmem:[#allocation7 + $0x98] sm:$0xff]
    %v162 = vld [vmem:[#allocation7 + $0xa0] sm:$0xff]
    %v163 = vld [vmem:[#allocation7 + $0xa8] sm:$0xff]
    %v164 = vld [vmem:[#allocation7 + $0xb0] sm:$0xff]
    %v165 = vld [vmem:[#allocation7 + $0xb8] sm:$0xff]
    %v166 = vld [vmem:[#allocation7 + $0xc0] sm:$0xff]
    %v167 = vld [vmem:[#allocation7 + $0xc8] sm:$0xff]
    %v168 = vld [vmem:[#allocation7 + $0xd0] sm:$0xff]
    %v169 = vld [vmem:[#allocation7 + $0xd8] sm:$0xff]
    %v170 = vld [vmem:[#allocation7 + $0xe0] sm:$0xff]
    %v171 = vld [vmem:[#allocation7 + $0xe8] sm:$0xff]
    %v172 = vld [vmem:[#allocation7 + $0xf0] sm:$0xff]
    %v173 = vld [vmem:[#allocation7 + $0xf8] sm:$0xff]
    %v174 = vld [vmem:[#allocation7 + $0x100] sm:$0xff]
    %v175 = vld [vmem:[#allocation7 + $0x108] sm:$0xff]
    %v176 = vld [vmem:[#allocation7 + $0x110] sm:$0xff]
    %v177 = vld [vmem:[#allocation7 + $0x118] sm:$0xff]
    %v178 = vld [vmem:[#allocation7 + $0x120] sm:$0xff]
    %v179 = vld [vmem:[#allocation7 + $0x128] sm:$0xff]
    %v180 = vld [vmem:[#allocation7 + $0x130] sm:$0xff]
    %v181 = vld [vmem:[#allocation7 + $0x138] sm:$0xff]
    %v182 = vld [vmem:[#allocation7 + $0x140] sm:$0xff]
    %v183 = vld [vmem:[#allocation7 + $0x148] sm:$0xff]
    %v184 = vld [vmem:[#allocation7 + $0x150] sm:$0xff]
    %v185 = vld [vmem:[#allocation7 + $0x158] sm:$0xff]
    %v186 = vld [vmem:[#allocation7 + $0x160] sm:$0xff]
    %v187 = vld [vmem:[#allocation7 + $0x168] sm:$0xff]
    %v188 = vld [vmem:[#allocation7 + $0x170] sm:$0xff]
    %v189 = vld [vmem:[#allocation7 + $0x178] sm:$0xff]
    %v190 = vld [vmem:[#allocation7 + $0x180] sm:$0xff]
    %v191 = vld [vmem:[#allocation7 + $0x188] sm:$0xff]
    %v192 = vld [vmem:[#allocation7 + $0x190] sm:$0xff]
    %v193 = vld [vmem:[#allocation7 + $0x198] sm:$0xff]
    %v194 = vld [vmem:[#allocation7 + $0x1a0] sm:$0xff]
    %v195 = vld [vmem:[#allocation7 + $0x1a8] sm:$0xff]
    %v196 = vld [vmem:[#allocation7 + $0x1b0] sm:$0xff]
    %v197 = vld [vmem:[#allocation7 + $0x1b8] sm:$0xff]
    %v198 = vld [vmem:[#allocation7 + $0x1c0] sm:$0xff]
    %v199 = vld [vmem:[#allocation7 + $0x1c8] sm:$0xff]
    %v200 = vld [vmem:[#allocation7 + $0x1d0] sm:$0xff]
    %v201 = vld [vmem:[#allocation7 + $0x1d8] sm:$0xff]
    %v202 = vld [vmem:[#allocation7 + $0x1e0] sm:$0xff]
    %v203 = vld [vmem:[#allocation7 + $0x1e8] sm:$0xff]
    %v204 = vld [vmem:[#allocation7 + $0x1f0] sm:$0xff]
    %v205 = vld [vmem:[#allocation7 + $0x1f8] sm:$0xff]
    %206 = vmatprep.subr.mxu0 %v143
    %207 = vmatpush1.msra.mxu0 %v142
    %208 = vmatprep.subr.mxu0 %v145
    %209 = vmatpush1.msra.mxu0 %v144
    %210 = vmatprep.subr.mxu0 %v147
    %211 = vmatpush1.msra.mxu0 %v146
    %212 = vmatprep.subr.mxu0 %v149
    %213 = vmatpush1.msra.mxu0 %v148
    %214 = vmatprep.subr.mxu0 %v151
    %215 = vmatpush1.msra.mxu0 %v150
    %216 = vmatprep.subr.mxu0 %v153
    %217 = vmatpush1.msra.mxu0 %v152
    %218 = vmatprep.subr.mxu0 %v155
    %219 = vmatpush1.msra.mxu0 %v154
    %220 = vmatprep.subr.mxu0 %v157
    %221 = vmatpush1.msra.mxu0 %v156
    %222 = vmatprep.subr.mxu0 %v159
    %223 = vmatpush1.msra.mxu0 %v158
    %224 = vmatprep.subr.mxu0 %v161
    %225 = vmatpush1.msra.mxu0 %v160
    %226 = vmatprep.subr.mxu0 %v163
    %227 = vmatpush1.msra.mxu0 %v162
    %228 = vmatprep.subr.mxu0 %v165
    %229 = vmatpush1.msra.mxu0 %v164
    %230 = vmatprep.subr.mxu0 %v167
    %231 = vmatpush1.msra.mxu0 %v166
    %232 = vmatprep.subr.mxu0 %v169
    %233 = vmatpush1.msra.mxu0 %v168
    %234 = vmatprep.subr.mxu0 %v171
    %235 = vmatpush1.msra.mxu0 %v170
    %236 = vmatprep.subr.mxu0 %v173
    %237 = vmatpush1.msra.mxu0 %v172
    %238 = vmatprep.subr.mxu0 %v175
    %239 = vmatpush1.msra.mxu0 %v174
    %240 = vmatprep.subr.mxu0 %v177
    %241 = vmatpush1.msra.mxu0 %v176
    %242 = vmatprep.subr.mxu0 %v179
    %243 = vmatpush1.msra.mxu0 %v178
    %244 = vmatprep.subr.mxu0 %v181
    %245 = vmatpush1.msra.mxu0 %v180
    %246 = vmatprep.subr.mxu0 %v183
    %247 = vmatpush1.msra.mxu0 %v182
    %248 = vmatprep.subr.mxu0 %v185
    %249 = vmatpush1.msra.mxu0 %v184
    %250 = vmatprep.subr.mxu0 %v187
    %251 = vmatpush1.msra.mxu0 %v186
    %252 = vmatprep.subr.mxu0 %v189
    %253 = vmatpush1.msra.mxu0 %v188
    %254 = vmatprep.subr.mxu0 %v191
    %255 = vmatpush1.msra.mxu0 %v190
    %256 = vmatprep.subr.mxu0 %v193
    %257 = vmatpush1.msra.mxu0 %v192
    %258 = vmatprep.subr.mxu0 %v195
    %259 = vmatpush1.msra.mxu0 %v194
    %260 = vmatprep.subr.mxu0 %v197
    %261 = vmatpush1.msra.mxu0 %v196
    %262 = vmatprep.subr.mxu0 %v199
    %263 = vmatpush1.msra.mxu0 %v198
    %264 = vmatprep.subr.mxu0 %v201
    %265 = vmatpush1.msra.mxu0 %v200
    %266 = vmatprep.subr.mxu0 %v203
    %267 = vmatpush1.msra.mxu0 %v202
    %268 = vmatprep.subr.mxu0 %v205
    %269 = vmatpush1.msra.mxu0 %v204
    %270 = vmatprep.mubr.f32.mxu0 %v141
    %271 = vmatmul.mubr.f32.gmra.mrb[0].mxu0 %v140
    %v272 = vpop.f32.mrb[0].mxu0
    %v273 = vadd.f32 0.0, %v272
    %v274 = vpop.f32.mrb[0].mxu0
    %v275 = vadd.f32 0.0, %v274
    %276 = vdwg.mxu0
    %v277 = vadd.f32 %v136, %v273
    %v278 = vadd.f32 %v137, %v275
    %279 = vst [vmem:[#allocation8] sm:$0xff] %v277
    %280 = vst [vmem:[#allocation8 + $0x8] sm:$0xff] %v278
    // Predicated region
    $region34: #{tpu_custom_call.1} parent=1 // pred_check
      _
    $region35: #{tpu_custom_call.1} parent=1 // pred_check_branch
      %282 = sbr.rel (0) target = $region37
    $region36: #{tpu_custom_call.1} parent=1 // pred_region
      %s284 = ssub.s32 256, 256
      %285 = vsyncadd [#allocation4], %s284
      %s287 = sshll.u32 [#allocation8], 4
      %s288 = int_to_ptr.vmem [resolvable:$true] %s287
      %290 = dma.vmem_to_hbm [thread:$0]  %s288, 256, %s5, [#allocation4]
    $region37: #{tpu_custom_call.1} parent=1 // pred_fallthru
      _
    // Predicated region
    $region38: #{tpu_custom_call.1} parent=1 // pred_check
      _
    $region39: #{tpu_custom_call.1} parent=1 // pred_check_branch
      %292 = sbr.rel (0) target = $region41
    $region40: #{tpu_custom_call.1} parent=1 // pred_region
      %s294 = ssub.s32 256, 256
      %295 = vsyncadd [#allocation10], %s294
      %s297 = sshll.u32 [#allocation9], 4
      %s298 = int_to_ptr.vmem [resolvable:$true] %s297
      %300 = dma.vmem_to_hbm [thread:$0]  %s298, 256, %s6, [#allocation10]
    $region41: #{tpu_custom_call.1} parent=1 // pred_fallthru
      _
    // Predicated region
    $region42: #{tpu_custom_call.1} parent=1 // pred_check
      _
    $region43: #{tpu_custom_call.1} parent=1 // pred_check_branch
      %302 = sbr.rel (0) target = $region45
    $region44: #{tpu_custom_call.1} parent=1 // pred_region
      %s304 = ssub.s32 256, 256
      %305 = vsyncadd [#allocation10], %s304
      %s307 = sshll.u32 [#allocation11], 4
      %s308 = int_to_ptr.vmem [resolvable:$true] %s307
      %310 = dma.vmem_to_hbm [thread:$0]  %s308, 256, %s7, [#allocation10]
    $region45: #{tpu_custom_call.1} parent=1 // pred_fallthru
      _
    // Predicated region
    $region46: #{tpu_custom_call.1} parent=1 // pred_check
      _
    $region47: #{tpu_custom_call.1} parent=1 // pred_check_branch
      %312 = sbr.rel (0) target = $region49
    $region48: #{tpu_custom_call.1} parent=1 // pred_region
      %313 = dma.done [#allocation4], 256
    $region49: #{tpu_custom_call.1} parent=1 // pred_fallthru
      _
    // Predicated region
    $region50: #{tpu_custom_call.1} parent=1 // pred_check
      _
    $region51: #{tpu_custom_call.1} parent=1 // pred_check_branch
      %315 = sbr.rel (0) target = $region53
    $region52: #{tpu_custom_call.1} parent=1 // pred_region
      %316 = dma.done [#allocation10], 256
    $region53: #{tpu_custom_call.1} parent=1 // pred_fallthru
      _
    // Predicated region
    $region54: #{tpu_custom_call.1} parent=1 // pred_check
      _
    $region55: #{tpu_custom_call.1} parent=1 // pred_check_branch
      %318 = sbr.rel (0) target = $region57
    $region56: #{tpu_custom_call.1} parent=1 // pred_region
      %319 = dma.done [#allocation10], 256
    $region57: #{tpu_custom_call.1} parent=1 // pred_fallthru
      _
    %320 = vsyncpa [#allocation3], 1
    %321 = vsyncpa [#allocation6], 1
    %322 = vsyncpa [#allocation4], 1
    %323 = vsyncpa [#allocation10], 1

</llo_original>
